<compile_context>
chip_gen: v7x
topology: tpu7x:2x2x1
jax: 0.10.0
libtpu: 0.0.40
codegen_flags: <defaults>
</compile_context>

<pallas_src>
import functools

import jax
import jax.numpy as jnp
import numpy as np
from jax.experimental import pallas as pl
from jax.experimental.pallas import tpu as pltpu


_LANES = 128
# Max spatial rows per tile (rows of 128 pixels). 2048 rows = 256K pixels.
_MAX_TILE_ROWS = 2048


def _fold(x, acc_rows):
    """(tile_rows, 128) -> (acc_rows, 128) via vreg-row-wise adds (pure VPU)."""
    tr = x.shape[0]
    if tr == acc_rows:
        return x
    return jnp.sum(x.reshape(tr // acc_rows, acc_rows, _LANES), axis=0)


def _precision_kernel(pred_ref, gt_ref, out_ref, tp_ref, pp_ref, *,
                      num_classes, n_valid, tile_rows, acc_rows, need_mask,
                      smooth):
    n_idx = pl.program_id(1)
    last = pl.num_programs(1) - 1

    @pl.when(n_idx == 0)
    def _init():
        tp_ref[...] = jnp.zeros_like(tp_ref)
        pp_ref[...] = jnp.zeros_like(pp_ref)

    def body(masked):
        # Unrolled running argmax over the (small) class axis; strict ">"
        # keeps the first occurrence on ties (matches jnp/torch argmax).
        # astype(f32) is a no-op for f32 inputs and handles bf16 pred cheaply.
        best = pred_ref[0, 0].astype(jnp.float32)          # (tile_rows, 128)
        best_idx = jnp.zeros(best.shape, jnp.int32)
        for c in range(1, num_classes):
            cur = pred_ref[0, c].astype(jnp.float32)
            take = cur > best
            best = jnp.where(take, cur, best)
            best_idx = jnp.where(take, jnp.int32(c), best_idx)

        gt = gt_ref[0]                                      # (tile_rows, 128)

        if masked:
            # Only the ragged last tile ever takes this path.
            row = jax.lax.broadcasted_iota(jnp.int32, best.shape, 0)
            lane = jax.lax.broadcasted_iota(jnp.int32, best.shape, 1)
            gidx = (n_idx * tile_rows + row) * _LANES + lane
            valid = gidx < n_valid

        for c in range(num_classes):
            hit = best_idx == c                             # predicted class c
            if masked:
                hit = jnp.logical_and(hit, valid)
            tp_c = jnp.logical_and(hit, gt == c)
            # Exact int32 accumulation (no f32 count drift); lane-dense adds.
            tp_ref[c] += _fold(tp_c.astype(jnp.int32), acc_rows)
            pp_ref[c] += _fold(hit.astype(jnp.int32), acc_rows)

    if need_mask:
        is_last = n_idx == last
        pl.when(is_last)(lambda: body(True))
        pl.when(jnp.logical_not(is_last))(lambda: body(False))
    else:
        body(False)

    @pl.when(n_idx == last)
    def _finalize():
        # One-time cross-lane/sublane reduction; f32 here matches the
        # float-one-hot sums of the reference module.
        tp = tp_ref[...].astype(jnp.float32)                # (C, acc_rows, 128)
        pp = pp_ref[...].astype(jnp.float32)
        tp_sum = jnp.sum(jnp.sum(tp, axis=2, keepdims=True), axis=1,
                         keepdims=True)                     # (C, 1, 1)
        pp_sum = jnp.sum(jnp.sum(pp, axis=2, keepdims=True), axis=1,
                         keepdims=True)
        prec = (tp_sum + smooth) / (pp_sum + smooth)        # (C, 1, 1)
        out_ref[0] = jnp.broadcast_to(prec.reshape(num_classes, 1),
                                      (num_classes, _LANES))


def precision_score(prediction, ground_truth, smooth=1e-9):
    """prediction: (B, C, H, W) float; ground_truth: (B, H, W) int -> scalar."""
    B, C, H, W = prediction.shape
    N = H * W
    R = pl.cdiv(N, _LANES)          # spatial rows of 128 pixels
    n_pad128 = R * _LANES

    pred = prediction.reshape(B, C, N)
    gt = ground_truth.reshape(B, N)
    # Narrow integer labels (int8/uint8) stream straight through -> fewer HBM
    # bytes on v5e; anything else is widened to int32.
    if gt.dtype not in (jnp.int8, jnp.uint8, jnp.int32):
        gt = gt.astype(jnp.int32)

    if n_pad128 != N:
        # Only the sub-128 ragged tail is padded (needed for the (R,128)
        # reshape); the in-kernel mask keeps the pad inert.
        pred = jnp.pad(pred, ((0, 0), (0, 0), (0, n_pad128 - N)))
        gt = jnp.pad(gt, ((0, 0), (0, n_pad128 - N)))

    pred = pred.reshape(B, C, R, _LANES)
    gt = gt.reshape(B, R, _LANES)

    tile_rows = R if R <= _MAX_TILE_ROWS else _MAX_TILE_ROWS
    num_n_tiles = pl.cdiv(R, tile_rows)
    acc_rows = 8 if tile_rows % 8 == 0 else tile_rows
    need_mask = (n_pad128 != N) or (R % tile_rows != 0)

    # Accurate VMEM footprint (double-buffered input blocks + scratch).
    pred_block = C * tile_rows * _LANES * pred.dtype.itemsize
    gt_block = tile_rows * _LANES * gt.dtype.itemsize
    acc_bytes = 2 * C * acc_rows * _LANES * 4
    out_block = C * _LANES * 4
    vmem_bytes = 2 * (pred_block + gt_block) + acc_bytes + out_block
    vmem_limit = int(min(100 * 2**20, max(32 * 2**20, 2 * vmem_bytes)))

    kernel = functools.partial(
        _precision_kernel,
        num_classes=C, n_valid=N, tile_rows=tile_rows, acc_rows=acc_rows,
        need_mask=need_mask, smooth=float(smooth))

    per_bc = pl.pallas_call(
        kernel,
        out_shape=jax.ShapeDtypeStruct((B, C, _LANES), jnp.float32),
        grid_spec=pltpu.PrefetchScalarGridSpec(
            num_scalar_prefetch=0,
            grid=(B, num_n_tiles),
            in_specs=[
                pl.BlockSpec((1, C, tile_rows, _LANES),
                             lambda b, n: (b, 0, n, 0)),
                pl.BlockSpec((1, tile_rows, _LANES),
                             lambda b, n: (b, n, 0)),
            ],
            out_specs=pl.BlockSpec((1, C, _LANES), lambda b, n: (b, 0, 0)),
            scratch_shapes=[
                pltpu.VMEM((C, acc_rows, _LANES), jnp.int32),   # TP
                pltpu.VMEM((C, acc_rows, _LANES), jnp.int32),   # TP + FP
            ],
        ),
        compiler_params=pltpu.CompilerParams(
            dimension_semantics=("parallel", "arbitrary"),
            vmem_limit_bytes=vmem_limit),
    )(pred, gt)

    # torch.mean(...).item(): scalar mean over (B, C); lanes hold identical copies.
    return jnp.mean(per_bc[:, :, 0])


def _reference(prediction, ground_truth, smooth=1e-9):
    """Pure-JAX replica of the PyTorch forward for verification."""
    C = prediction.shape[1]
    pred_oh = jax.nn.one_hot(jnp.argmax(prediction, axis=1), C, axis=1,
                             dtype=jnp.float32)
    gt_oh = jax.nn.one_hot(ground_truth, C, axis=1, dtype=jnp.float32)
    tp = jnp.sum(gt_oh * pred_oh, axis=(2, 3))
    fp = jnp.sum(pred_oh, axis=(2, 3)) - tp
    return jnp.mean((tp + smooth) / (tp + fp + smooth))


if __name__ == "__main__":
    key = jax.random.PRNGKey(0)
    kp, kg = jax.random.split(key)
    B, C, H, W = 2, 4, 16, 16
    prediction = jax.random.normal(kp, (B, C, H, W), dtype=jnp.float32)
    ground_truth = jax.random.randint(kg, (B, H, W), 0, C, dtype=jnp.int32)

    result = precision_score(prediction, ground_truth)
    result = jax.block_until_ready(result)

    ref = _reference(prediction, ground_truth)
    assert np.allclose(np.asarray(result), np.asarray(ref), atol=1e-6), (result, ref)
    print("KERNEL_OK")
</pallas_src>

<mosaic_0001>
module attributes {stable_mosaic.version = 11 : i64} {
  func.func @_precision_kernel(%arg0: i32, %arg1: i32, %arg2: memref<1x4x2x128xf32, #tpu.memory_space<vmem>>, %arg3: memref<1x2x128xi32, #tpu.memory_space<vmem>>, %arg4: memref<1x4x128xf32, #tpu.memory_space<vmem>>, %arg5: memref<4x2x128xi32, #tpu.memory_space<vmem>>, %arg6: memref<4x2x128xi32, #tpu.memory_space<vmem>>) attributes {dimension_semantics = [#tpu.dimension_semantics<parallel>, #tpu.dimension_semantics<arbitrary>], iteration_bounds = array<i64: 2, 1>, scalar_prefetch = 0 : i64, scratch_operands = 2 : i64, tpu.core_type = #tpu.core_type<tc>, window_params = [{transform_indices = @transform_0, window_bounds = array<i64: 1, 4, 2, 128>}, {transform_indices = @transform_1, window_bounds = array<i64: 1, 2, 128>}, {transform_indices = @transform_2, window_bounds = array<i64: 1, 4, 128>}]} {
    %c0_i32 = arith.constant 0 : i32
    %0 = arith.cmpi eq, %arg1, %c0_i32 : i32
    %1 = arith.extui %0 : i1 to i32
    %c0_i32_0 = arith.constant 0 : i32
    %2 = arith.cmpi ne, %1, %c0_i32_0 : i32
    scf.if %2 {
      %c0_i32_75 = arith.constant 0 : i32
      %104 = vector.broadcast %c0_i32_75 : i32 to vector<4x2x128xi32>
      %c0_76 = arith.constant 0 : index
      %c0_77 = arith.constant 0 : index
      %c0_78 = arith.constant 0 : index
      %105 = vector.load %arg5[%c0_76, %c0_77, %c0_78] : memref<4x2x128xi32, #tpu.memory_space<vmem>>, vector<4x2x128xi32>
      tpu.vector_store %arg5[%c0_76, %c0_77, %c0_78], %104 {strides = array<i32>} : memref<4x2x128xi32, #tpu.memory_space<vmem>>, vector<4x2x128xi32>,
      %c0_i32_79 = arith.constant 0 : i32
      %106 = vector.broadcast %c0_i32_79 : i32 to vector<4x2x128xi32>
      %c0_80 = arith.constant 0 : index
      %c0_81 = arith.constant 0 : index
      %c0_82 = arith.constant 0 : index
      %107 = vector.load %arg6[%c0_80, %c0_81, %c0_82] : memref<4x2x128xi32, #tpu.memory_space<vmem>>, vector<4x2x128xi32>
      tpu.vector_store %arg6[%c0_80, %c0_81, %c0_82], %106 {strides = array<i32>} : memref<4x2x128xi32, #tpu.memory_space<vmem>>, vector<4x2x128xi32>,
    } else {
    }
    %c0 = arith.constant 0 : index
    %c0_1 = arith.constant 0 : index
    %c0_2 = arith.constant 0 : index
    %c0_3 = arith.constant 0 : index
    %3 = vector.load %arg2[%c0, %c0_1, %c0_2, %c0_3] : memref<1x4x2x128xf32, #tpu.memory_space<vmem>>, vector<1x1x2x128xf32>
    %4 = vector.shape_cast %3 : vector<1x1x2x128xf32> to vector<2x128xf32>
    %c0_i32_4 = arith.constant 0 : i32
    %5 = vector.broadcast %c0_i32_4 : i32 to vector<2x128xi32>
    %c0_5 = arith.constant 0 : index
    %c1 = arith.constant 1 : index
    %c0_6 = arith.constant 0 : index
    %c0_7 = arith.constant 0 : index
    %6 = vector.load %arg2[%c0_5, %c1, %c0_6, %c0_7] : memref<1x4x2x128xf32, #tpu.memory_space<vmem>>, vector<1x1x2x128xf32>
    %7 = vector.shape_cast %6 : vector<1x1x2x128xf32> to vector<2x128xf32>
    %8 = arith.cmpf ogt, %7, %4 : vector<2x128xf32>
    %9 = arith.select %8, %7, %4 : vector<2x128xi1>, vector<2x128xf32>
    %c1_i32 = arith.constant 1 : i32
    %10 = vector.broadcast %c1_i32 : i32 to vector<2x128xi32>
    %11 = arith.select %8, %10, %5 : vector<2x128xi1>, vector<2x128xi32>
    %c0_8 = arith.constant 0 : index
    %c2 = arith.constant 2 : index
    %c0_9 = arith.constant 0 : index
    %c0_10 = arith.constant 0 : index
    %12 = vector.load %arg2[%c0_8, %c2, %c0_9, %c0_10] : memref<1x4x2x128xf32, #tpu.memory_space<vmem>>, vector<1x1x2x128xf32>
    %13 = vector.shape_cast %12 : vector<1x1x2x128xf32> to vector<2x128xf32>
    %14 = arith.cmpf ogt, %13, %9 : vector<2x128xf32>
    %15 = arith.select %14, %13, %9 : vector<2x128xi1>, vector<2x128xf32>
    %c2_i32 = arith.constant 2 : i32
    %16 = vector.broadcast %c2_i32 : i32 to vector<2x128xi32>
    %17 = arith.select %14, %16, %11 : vector<2x128xi1>, vector<2x128xi32>
    %c0_11 = arith.constant 0 : index
    %c3 = arith.constant 3 : index
    %c0_12 = arith.constant 0 : index
    %c0_13 = arith.constant 0 : index
    %18 = vector.load %arg2[%c0_11, %c3, %c0_12, %c0_13] : memref<1x4x2x128xf32, #tpu.memory_space<vmem>>, vector<1x1x2x128xf32>
    %19 = vector.shape_cast %18 : vector<1x1x2x128xf32> to vector<2x128xf32>
    %20 = arith.cmpf ogt, %19, %15 : vector<2x128xf32>
    %c3_i32 = arith.constant 3 : i32
    %21 = vector.broadcast %c3_i32 : i32 to vector<2x128xi32>
    %22 = arith.select %20, %21, %17 : vector<2x128xi1>, vector<2x128xi32>
    %c0_14 = arith.constant 0 : index
    %c0_15 = arith.constant 0 : index
    %c0_16 = arith.constant 0 : index
    %23 = vector.load %arg3[%c0_14, %c0_15, %c0_16] : memref<1x2x128xi32, #tpu.memory_space<vmem>>, vector<1x2x128xi32>
    %24 = vector.shape_cast %23 : vector<1x2x128xi32> to vector<2x128xi32>
    %c0_i32_17 = arith.constant 0 : i32
    %25 = vector.broadcast %c0_i32_17 : i32 to vector<2x128xi32>
    %26 = arith.cmpi eq, %22, %25 : vector<2x128xi32>
    %c0_i32_18 = arith.constant 0 : i32
    %27 = vector.broadcast %c0_i32_18 : i32 to vector<2x128xi32>
    %28 = arith.cmpi eq, %24, %27 : vector<2x128xi32>
    %29 = arith.andi %26, %28 : vector<2x128xi1>
    %c0_19 = arith.constant 0 : index
    %c0_20 = arith.constant 0 : index
    %c0_21 = arith.constant 0 : index
    %30 = vector.load %arg5[%c0_19, %c0_20, %c0_21] : memref<4x2x128xi32, #tpu.memory_space<vmem>>, vector<1x2x128xi32>
    %31 = vector.shape_cast %30 : vector<1x2x128xi32> to vector<2x128xi32>
    %32 = arith.extui %29 : vector<2x128xi1> to vector<2x128xi32>
    %33 = arith.addi %31, %32 : vector<2x128xi32>
    %c0_22 = arith.constant 0 : index
    %c0_23 = arith.constant 0 : index
    %c0_24 = arith.constant 0 : index
    %34 = vector.load %arg5[%c0_22, %c0_23, %c0_24] : memref<4x2x128xi32, #tpu.memory_space<vmem>>, vector<1x2x128xi32>
    %35 = vector.shape_cast %34 : vector<1x2x128xi32> to vector<2x128xi32>
    %36 = vector.shape_cast %33 : vector<2x128xi32> to vector<1x2x128xi32>
    tpu.vector_store %arg5[%c0_22, %c0_23, %c0_24], %36 {strides = array<i32>} : memref<4x2x128xi32, #tpu.memory_space<vmem>>, vector<1x2x128xi32>,
    %c0_25 = arith.constant 0 : index
    %c0_26 = arith.constant 0 : index
    %c0_27 = arith.constant 0 : index
    %37 = vector.load %arg6[%c0_25, %c0_26, %c0_27] : memref<4x2x128xi32, #tpu.memory_space<vmem>>, vector<1x2x128xi32>
    %38 = vector.shape_cast %37 : vector<1x2x128xi32> to vector<2x128xi32>
    %39 = arith.extui %26 : vector<2x128xi1> to vector<2x128xi32>
    %40 = arith.addi %38, %39 : vector<2x128xi32>
    %c0_28 = arith.constant 0 : index
    %c0_29 = arith.constant 0 : index
    %c0_30 = arith.constant 0 : index
    %41 = vector.load %arg6[%c0_28, %c0_29, %c0_30] : memref<4x2x128xi32, #tpu.memory_space<vmem>>, vector<1x2x128xi32>
    %42 = vector.shape_cast %41 : vector<1x2x128xi32> to vector<2x128xi32>
    %43 = vector.shape_cast %40 : vector<2x128xi32> to vector<1x2x128xi32>
    tpu.vector_store %arg6[%c0_28, %c0_29, %c0_30], %43 {strides = array<i32>} : memref<4x2x128xi32, #tpu.memory_space<vmem>>, vector<1x2x128xi32>,
    %c1_i32_31 = arith.constant 1 : i32
    %44 = vector.broadcast %c1_i32_31 : i32 to vector<2x128xi32>
    %45 = arith.cmpi eq, %22, %44 : vector<2x128xi32>
    %c1_i32_32 = arith.constant 1 : i32
    %46 = vector.broadcast %c1_i32_32 : i32 to vector<2x128xi32>
    %47 = arith.cmpi eq, %24, %46 : vector<2x128xi32>
    %48 = arith.andi %45, %47 : vector<2x128xi1>
    %c1_33 = arith.constant 1 : index
    %c0_34 = arith.constant 0 : index
    %c0_35 = arith.constant 0 : index
    %49 = vector.load %arg5[%c1_33, %c0_34, %c0_35] : memref<4x2x128xi32, #tpu.memory_space<vmem>>, vector<1x2x128xi32>
    %50 = vector.shape_cast %49 : vector<1x2x128xi32> to vector<2x128xi32>
    %51 = arith.extui %48 : vector<2x128xi1> to vector<2x128xi32>
    %52 = arith.addi %50, %51 : vector<2x128xi32>
    %c1_36 = arith.constant 1 : index
    %c0_37 = arith.constant 0 : index
    %c0_38 = arith.constant 0 : index
    %53 = vector.load %arg5[%c1_36, %c0_37, %c0_38] : memref<4x2x128xi32, #tpu.memory_space<vmem>>, vector<1x2x128xi32>
    %54 = vector.shape_cast %53 : vector<1x2x128xi32> to vector<2x128xi32>
    %55 = vector.shape_cast %52 : vector<2x128xi32> to vector<1x2x128xi32>
    tpu.vector_store %arg5[%c1_36, %c0_37, %c0_38], %55 {strides = array<i32>} : memref<4x2x128xi32, #tpu.memory_space<vmem>>, vector<1x2x128xi32>,
    %c1_39 = arith.constant 1 : index
    %c0_40 = arith.constant 0 : index
    %c0_41 = arith.constant 0 : index
    %56 = vector.load %arg6[%c1_39, %c0_40, %c0_41] : memref<4x2x128xi32, #tpu.memory_space<vmem>>, vector<1x2x128xi32>
    %57 = vector.shape_cast %56 : vector<1x2x128xi32> to vector<2x128xi32>
    %58 = arith.extui %45 : vector<2x128xi1> to vector<2x128xi32>
    %59 = arith.addi %57, %58 : vector<2x128xi32>
    %c1_42 = arith.constant 1 : index
    %c0_43 = arith.constant 0 : index
    %c0_44 = arith.constant 0 : index
    %60 = vector.load %arg6[%c1_42, %c0_43, %c0_44] : memref<4x2x128xi32, #tpu.memory_space<vmem>>, vector<1x2x128xi32>
    %61 = vector.shape_cast %60 : vector<1x2x128xi32> to vector<2x128xi32>
    %62 = vector.shape_cast %59 : vector<2x128xi32> to vector<1x2x128xi32>
    tpu.vector_store %arg6[%c1_42, %c0_43, %c0_44], %62 {strides = array<i32>} : memref<4x2x128xi32, #tpu.memory_space<vmem>>, vector<1x2x128xi32>,
    %c2_i32_45 = arith.constant 2 : i32
    %63 = vector.broadcast %c2_i32_45 : i32 to vector<2x128xi32>
    %64 = arith.cmpi eq, %22, %63 : vector<2x128xi32>
    %c2_i32_46 = arith.constant 2 : i32
    %65 = vector.broadcast %c2_i32_46 : i32 to vector<2x128xi32>
    %66 = arith.cmpi eq, %24, %65 : vector<2x128xi32>
    %67 = arith.andi %64, %66 : vector<2x128xi1>
    %c2_47 = arith.constant 2 : index
    %c0_48 = arith.constant 0 : index
    %c0_49 = arith.constant 0 : index
    %68 = vector.load %arg5[%c2_47, %c0_48, %c0_49] : memref<4x2x128xi32, #tpu.memory_space<vmem>>, vector<1x2x128xi32>
    %69 = vector.shape_cast %68 : vector<1x2x128xi32> to vector<2x128xi32>
    %70 = arith.extui %67 : vector<2x128xi1> to vector<2x128xi32>
    %71 = arith.addi %69, %70 : vector<2x128xi32>
    %c2_50 = arith.constant 2 : index
    %c0_51 = arith.constant 0 : index
    %c0_52 = arith.constant 0 : index
    %72 = vector.load %arg5[%c2_50, %c0_51, %c0_52] : memref<4x2x128xi32, #tpu.memory_space<vmem>>, vector<1x2x128xi32>
    %73 = vector.shape_cast %72 : vector<1x2x128xi32> to vector<2x128xi32>
    %74 = vector.shape_cast %71 : vector<2x128xi32> to vector<1x2x128xi32>
    tpu.vector_store %arg5[%c2_50, %c0_51, %c0_52], %74 {strides = array<i32>} : memref<4x2x128xi32, #tpu.memory_space<vmem>>, vector<1x2x128xi32>,
    %c2_53 = arith.constant 2 : index
    %c0_54 = arith.constant 0 : index
    %c0_55 = arith.constant 0 : index
    %75 = vector.load %arg6[%c2_53, %c0_54, %c0_55] : memref<4x2x128xi32, #tpu.memory_space<vmem>>, vector<1x2x128xi32>
    %76 = vector.shape_cast %75 : vector<1x2x128xi32> to vector<2x128xi32>
    %77 = arith.extui %64 : vector<2x128xi1> to vector<2x128xi32>
    %78 = arith.addi %76, %77 : vector<2x128xi32>
    %c2_56 = arith.constant 2 : index
    %c0_57 = arith.constant 0 : index
    %c0_58 = arith.constant 0 : index
    %79 = vector.load %arg6[%c2_56, %c0_57, %c0_58] : memref<4x2x128xi32, #tpu.memory_space<vmem>>, vector<1x2x128xi32>
    %80 = vector.shape_cast %79 : vector<1x2x128xi32> to vector<2x128xi32>
    %81 = vector.shape_cast %78 : vector<2x128xi32> to vector<1x2x128xi32>
    tpu.vector_store %arg6[%c2_56, %c0_57, %c0_58], %81 {strides = array<i32>} : memref<4x2x128xi32, #tpu.memory_space<vmem>>, vector<1x2x128xi32>,
    %c3_i32_59 = arith.constant 3 : i32
    %82 = vector.broadcast %c3_i32_59 : i32 to vector<2x128xi32>
    %83 = arith.cmpi eq, %22, %82 : vector<2x128xi32>
    %c3_i32_60 = arith.constant 3 : i32
    %84 = vector.broadcast %c3_i32_60 : i32 to vector<2x128xi32>
    %85 = arith.cmpi eq, %24, %84 : vector<2x128xi32>
    %86 = arith.andi %83, %85 : vector<2x128xi1>
    %c3_61 = arith.constant 3 : index
    %c0_62 = arith.constant 0 : index
    %c0_63 = arith.constant 0 : index
    %87 = vector.load %arg5[%c3_61, %c0_62, %c0_63] : memref<4x2x128xi32, #tpu.memory_space<vmem>>, vector<1x2x128xi32>
    %88 = vector.shape_cast %87 : vector<1x2x128xi32> to vector<2x128xi32>
    %89 = arith.extui %86 : vector<2x128xi1> to vector<2x128xi32>
    %90 = arith.addi %88, %89 : vector<2x128xi32>
    %c3_64 = arith.constant 3 : index
    %c0_65 = arith.constant 0 : index
    %c0_66 = arith.constant 0 : index
    %91 = vector.load %arg5[%c3_64, %c0_65, %c0_66] : memref<4x2x128xi32, #tpu.memory_space<vmem>>, vector<1x2x128xi32>
    %92 = vector.shape_cast %91 : vector<1x2x128xi32> to vector<2x128xi32>
    %93 = vector.shape_cast %90 : vector<2x128xi32> to vector<1x2x128xi32>
    tpu.vector_store %arg5[%c3_64, %c0_65, %c0_66], %93 {strides = array<i32>} : memref<4x2x128xi32, #tpu.memory_space<vmem>>, vector<1x2x128xi32>,
    %c3_67 = arith.constant 3 : index
    %c0_68 = arith.constant 0 : index
    %c0_69 = arith.constant 0 : index
    %94 = vector.load %arg6[%c3_67, %c0_68, %c0_69] : memref<4x2x128xi32, #tpu.memory_space<vmem>>, vector<1x2x128xi32>
    %95 = vector.shape_cast %94 : vector<1x2x128xi32> to vector<2x128xi32>
    %96 = arith.extui %83 : vector<2x128xi1> to vector<2x128xi32>
    %97 = arith.addi %95, %96 : vector<2x128xi32>
    %c3_70 = arith.constant 3 : index
    %c0_71 = arith.constant 0 : index
    %c0_72 = arith.constant 0 : index
    %98 = vector.load %arg6[%c3_70, %c0_71, %c0_72] : memref<4x2x128xi32, #tpu.memory_space<vmem>>, vector<1x2x128xi32>
    %99 = vector.shape_cast %98 : vector<1x2x128xi32> to vector<2x128xi32>
    %100 = vector.shape_cast %97 : vector<2x128xi32> to vector<1x2x128xi32>
    tpu.vector_store %arg6[%c3_70, %c0_71, %c0_72], %100 {strides = array<i32>} : memref<4x2x128xi32, #tpu.memory_space<vmem>>, vector<1x2x128xi32>,
    %c0_i32_73 = arith.constant 0 : i32
    %101 = arith.cmpi eq, %arg1, %c0_i32_73 : i32
    %102 = arith.extui %101 : i1 to i32
    %c0_i32_74 = arith.constant 0 : i32
    %103 = arith.cmpi ne, %102, %c0_i32_74 : i32
    scf.if %103 {
      %c0_75 = arith.constant 0 : index
      %c0_76 = arith.constant 0 : index
      %c0_77 = arith.constant 0 : index
      %104 = vector.load %arg5[%c0_75, %c0_76, %c0_77] : memref<4x2x128xi32, #tpu.memory_space<vmem>>, vector<4x2x128xi32>
      %105 = arith.sitofp %104 : vector<4x2x128xi32> to vector<4x2x128xf32>
      %c0_78 = arith.constant 0 : index
      %c0_79 = arith.constant 0 : index
      %c0_80 = arith.constant 0 : index
      %106 = vector.load %arg6[%c0_78, %c0_79, %c0_80] : memref<4x2x128xi32, #tpu.memory_space<vmem>>, vector<4x2x128xi32>
      %107 = arith.sitofp %106 : vector<4x2x128xi32> to vector<4x2x128xf32>
      %cst = arith.constant dense<0.000000e+00> : vector<4x2xf32>
      %108 = vector.multi_reduction <add>, %105, %cst [2] : vector<4x2x128xf32> to vector<4x2xf32>
      %109 = vector.shape_cast %108 : vector<4x2xf32> to vector<4x2x1xf32>
      %cst_81 = arith.constant dense<0.000000e+00> : vector<4x1xf32>
      %110 = vector.multi_reduction <add>, %109, %cst_81 [1] : vector<4x2x1xf32> to vector<4x1xf32>
      %111 = vector.shape_cast %110 : vector<4x1xf32> to vector<4x1x1xf32>
      %cst_82 = arith.constant dense<0.000000e+00> : vector<4x2xf32>
      %112 = vector.multi_reduction <add>, %107, %cst_82 [2] : vector<4x2x128xf32> to vector<4x2xf32>
      %113 = vector.shape_cast %112 : vector<4x2xf32> to vector<4x2x1xf32>
      %cst_83 = arith.constant dense<0.000000e+00> : vector<4x1xf32>
      %114 = vector.multi_reduction <add>, %113, %cst_83 [1] : vector<4x2x1xf32> to vector<4x1xf32>
      %115 = vector.shape_cast %114 : vector<4x1xf32> to vector<4x1x1xf32>
      %cst_84 = arith.constant 9.99999971E-10 : f32
      %116 = vector.broadcast %cst_84 : f32 to vector<4x1x1xf32>
      %117 = arith.addf %111, %116 : vector<4x1x1xf32>
      %cst_85 = arith.constant 9.99999971E-10 : f32
      %118 = vector.broadcast %cst_85 : f32 to vector<4x1x1xf32>
      %119 = arith.addf %115, %118 : vector<4x1x1xf32>
      %120 = arith.divf %117, %119 : vector<4x1x1xf32>
      %121 = vector.shape_cast %120 : vector<4x1x1xf32> to vector<4x1xf32>
      %122 = vector.shape_cast %121 : vector<4x1xf32> to vector<4x1xf32>
      %123 = vector.broadcast %122 : vector<4x1xf32> to vector<4x128xf32>
      %c0_86 = arith.constant 0 : index
      %c0_87 = arith.constant 0 : index
      %c0_88 = arith.constant 0 : index
      %124 = vector.load %arg4[%c0_86, %c0_87, %c0_88] : memref<1x4x128xf32, #tpu.memory_space<vmem>>, vector<1x4x128xf32>
      %125 = vector.shape_cast %124 : vector<1x4x128xf32> to vector<4x128xf32>
      %126 = vector.shape_cast %123 : vector<4x128xf32> to vector<1x4x128xf32>
      tpu.vector_store %arg4[%c0_86, %c0_87, %c0_88], %126 {strides = array<i32>} : memref<1x4x128xf32, #tpu.memory_space<vmem>>, vector<1x4x128xf32>,
    } else {
    }
    return
  }
  func.func @transform_0(%arg0: i32, %arg1: i32) -> (i32, i32, i32, i32) {
    %c0_i32 = arith.constant 0 : i32
    %c0_i32_0 = arith.constant 0 : i32
    %c0_i32_1 = arith.constant 0 : i32
    return %arg0, %c0_i32, %arg1, %c0_i32_0 : i32, i32, i32, i32
  }
  func.func @transform_1(%arg0: i32, %arg1: i32) -> (i32, i32, i32) {
    %c0_i32 = arith.constant 0 : i32
    %c0_i32_0 = arith.constant 0 : i32
    return %arg0, %arg1, %c0_i32 : i32, i32, i32
  }
  func.func @transform_2(%arg0: i32, %arg1: i32) -> (i32, i32, i32) {
    %c0_i32 = arith.constant 0 : i32
    %c0_i32_0 = arith.constant 0 : i32
    %c0_i32_1 = arith.constant 0 : i32
    return %arg0, %c0_i32, %c0_i32_0 : i32, i32, i32
  }
}

</mosaic_0001>

<llo_original>
// kernel: tpu_custom_call.1
$region0: #{tpu_custom_call.1}
  #allocation0 [shape = 'u32[]', space=smem, size = 0x4, offset = 0x4, fixed_abs, tag = 'smem constant byte address 0x4 - core index']
  #allocation1 [shape = 'u32[144,128]{1,0:T(1,128)}', space=vmem, size = 0x12000, scoped, tag = 'internal scratch']
  #allocation2 [shape = 's32[4,2,128]{2,1,0:T(2,128)}', space=vmem, size = 0x1000, scoped, tag = 'scratch operand']
  #allocation3 [shape = 's32[4,2,128]{2,1,0:T(2,128)}', space=vmem, size = 0x1000, scoped, tag = 'scratch operand']
  %s0 = inlined_call_operand.hbm [shape: f32[2,4,2,128], index: 0, kind: input, shape index: {}]
  %s1 = inlined_call_operand.hbm [shape: s32[2,2,128], index: 1, kind: input, shape index: {}]
  %s2 = inlined_call_operand.hbm [shape: f32[2,4,128], index: 2, kind: output, shape index: {}]
  %s3 = sld [smem:[#allocation0]]
  $region57: #{tpu_custom_call.1} parent=0
    _
  %s5 = ssub.s32 1, %s3
  %s6 = scalar_select 0, %s5, %s3
  $region1: #{tpu_custom_call.1} parent=0
    #allocation4 [shape = 'u8[8192]{0}', space=vmem, size = 0x2000, scoped, tag = 'input window, operand 0']
    #allocation5 [shape = 's32[2]{0}', space=sflag, size = 0x8, scoped, tag = 'scoped memory for tpu_custom_call.1']
    #allocation6 [shape = 's32[2]{0}', space=sflag, size = 0x8, scoped, tag = 'scoped memory for tpu_custom_call.1']
    #allocation7 [shape = 'u8[2048]{0}', space=vmem, size = 0x800, scoped, tag = 'input window, operand 1']
    #allocation8 [shape = 's32[2]{0}', space=sflag, size = 0x8, scoped, tag = 'scoped memory for tpu_custom_call.1']
    #allocation9 [shape = 'u8[4096]{0}', space=vmem, size = 0x1000, scoped, tag = 'output window, operand 0']
    %7 = vsyncpa [#allocation5], 0
    %s8 = scalar_lea.sflag [#allocation5], 1
    %9 = vsyncpa %s8, 0
    %10 = vsyncpa [#allocation8], 0
    %s11 = scalar_lea.sflag [#allocation8], 1
    %12 = vsyncpa %s11, 0
    %13 = vsyncpa [#allocation6], 0
    %s14 = scalar_lea.sflag [#allocation6], 1
    %15 = vsyncpa %s14, 0
    loop: start=0, step=1, limit=4
    $region2: #{tpu_custom_call.1} parent=1 // loop_pre_header
      _
    $region3: #{tpu_custom_call.1} parent=1 // loop_header
      %s17 = sphi 0, %s21
      %p18 = scmp.ge.s32.totalorder %s17, 4
      %s24 = sphi 0, %s36
      %s25 = sphi 0, %s32
      %s26 = sphi 0, %s24
      %s27 = sphi 0, %s25
      %s28 = sphi 0, %s26
      %s29 = sphi 0, %s27
      %s41 = sphi 0, %s43
      %s44 = sphi 0, %s41
      %s45 = sphi 0, %s44
      %s61 = sphi 0, %s45
      %s69 = sphi 0, %s71
      %s72 = sphi 0, %s69
      %s73 = sphi 0, %s72
      %s89 = sphi 0, %s73
      %s95 = sphi 0, %s97
      %s98 = sphi 0, %s95
      %s99 = sphi 0, %s98
      %s115 = sphi 0, %s99
    $region4: #{tpu_custom_call.1} parent=1 // loop_header_branch
      %20 = sbr.rel (%p18) target = $region8
    $region5: #{tpu_custom_call.1} parent=1 // loop_body
      %s22 = ssub.s32 %s17, 1
      %s23 = ssub.s32 %s17, 2
      %s30 = sadd.s32 1, %s25
      %p31 = scmp.ge.s32.totalorder %s30, 1
      %s32 = scalar_select %p31, 0, %s30
      %s33 = sadd.s32 1, %s24
      %s34 = scalar_select %p31, %s33, %s24
      %p35 = scmp.ge.s32.totalorder %s34, 2
      %s36 = scalar_select %p35, 0, %s34
      %s37 = ssub.s32 %s24, %s36
      %s38 = ssub.s32 %s25, %s32
      %s39 = sor.u32 %s37, %s38
      %p40 = scmp.eq.s32.totalorder %s39, 0
      %s42 = sadd.s32 %s41, 1
      %s43 = scalar_select %p40, %s41, %s42
      %p46 = pneg %p40
      %p47 = scmp.eq.s32.totalorder %s17, 1
      %p48 = por %p46, %p47
      %p49 = scmp.ne.s32.totalorder %s41, %s44
      %p50 = scmp.eq.s32.totalorder %s17, 0
      %p51 = por %p49, %p50
      %p52 = scmp.ne.s32.totalorder %s41, %s44
      %p53 = scmp.eq.s32.totalorder %s22, 1
      %p54 = por %p52, %p53
      %p55 = scmp.ne.s32.totalorder %s44, %s45
      %p56 = scmp.eq.s32.totalorder %s22, 0
      %p57 = por %p55, %p56
      %p58 = scmp.ne.s32.totalorder %s44, %s45
      %p59 = scmp.eq.s32.totalorder %s23, 1
      %p60 = por %p58, %p59
      %p62 = scmp.ne.s32.totalorder %s45, %s61
      %p63 = scmp.eq.s32.totalorder %s23, 0
      %p64 = por %p62, %p63
      %s65 = ssub.s32 %s24, %s36
      %s66 = ssub.s32 %s25, %s32
      %s67 = sor.u32 %s65, %s66
      %p68 = scmp.eq.s32.totalorder %s67, 0
      %s70 = sadd.s32 %s69, 1
      %s71 = scalar_select %p68, %s69, %s70
      %p74 = pneg %p68
      %p75 = scmp.eq.s32.totalorder %s17, 1
      %p76 = por %p74, %p75
      %p77 = scmp.ne.s32.totalorder %s69, %s72
      %p78 = scmp.eq.s32.totalorder %s17, 0
      %p79 = por %p77, %p78
      %p80 = scmp.ne.s32.totalorder %s69, %s72
      %p81 = scmp.eq.s32.totalorder %s22, 1
      %p82 = por %p80, %p81
      %p83 = scmp.ne.s32.totalorder %s72, %s73
      %p84 = scmp.eq.s32.totalorder %s22, 0
      %p85 = por %p83, %p84
      %p86 = scmp.ne.s32.totalorder %s72, %s73
      %p87 = scmp.eq.s32.totalorder %s23, 1
      %p88 = por %p86, %p87
      %p90 = scmp.ne.s32.totalorder %s73, %s89
      %p91 = scmp.eq.s32.totalorder %s23, 0
      %p92 = por %p90, %p91
      %s93 = ssub.s32 %s24, %s36
      %p94 = scmp.eq.s32.totalorder %s93, 0
      %s96 = sadd.s32 %s95, 1
      %s97 = scalar_select %p94, %s95, %s96
      %p100 = pneg %p94
      %p101 = scmp.eq.s32.totalorder %s17, 1
      %p102 = por %p100, %p101
      %p103 = scmp.ne.s32.totalorder %s95, %s98
      %p104 = scmp.eq.s32.totalorder %s17, 0
      %p105 = por %p103, %p104
      %p106 = scmp.ne.s32.totalorder %s95, %s98
      %p107 = scmp.eq.s32.totalorder %s22, 1
      %p108 = por %p106, %p107
      %p109 = scmp.ne.s32.totalorder %s98, %s99
      %p110 = scmp.eq.s32.totalorder %s22, 0
      %p111 = por %p109, %p110
      %p112 = scmp.ne.s32.totalorder %s98, %s99
      %p113 = scmp.eq.s32.totalorder %s23, 1
      %p114 = por %p112, %p113
      %p116 = scmp.ne.s32.totalorder %s99, %s115
      %p117 = scmp.eq.s32.totalorder %s23, 0
      %p118 = por %p116, %p117
      %p119 = scmp.le.s32.totalorder 1, %s17
      %p120 = scmp.lt.s32.totalorder %s17, 3
      %p121 = pnand %p119, %p120
      %p122 = pneg %p121
      // Predicated region
      $region9: #{tpu_custom_call.1} parent=5 // pred_check
        _
      $region10: #{tpu_custom_call.1} parent=5 // pred_check_branch
        %124 = sbr.rel (%p121) target = $region12
      $region11: #{tpu_custom_call.1} parent=5 // pred_region
        %s125 = ssub.s32 %s17, 1
      $region12: #{tpu_custom_call.1} parent=5 // pred_fallthru
        _
      %p126 = scmp.lt.s32.totalorder %s17, 2
      // Predicated region
      $region13: #{tpu_custom_call.1} parent=5 // pred_check
        %p127 = pneg %p126
      $region14: #{tpu_custom_call.1} parent=5 // pred_check_branch
        %129 = sbr.rel (%p127) target = $region16
      $region15: #{tpu_custom_call.1} parent=5 // pred_region
        // Predicated region
        $region17: #{tpu_custom_call.1} parent=15 // pred_check
          %p130 = pneg %p51
        $region18: #{tpu_custom_call.1} parent=15 // pred_check_branch
          %132 = sbr.rel (%p130) target = $region20
        $region19: #{tpu_custom_call.1} parent=15 // pred_region
          %s133 = sand.u32 %s41, 1
          %s134 = scalar_lea.sflag [#allocation5], %s133
          %s135 = sand.u32 %s41, 1
          %s136 = smul.addr %s135, 8
          %s137 = scalar_lea.vmem [#allocation4], %s136
          %s139 = ssub.s32 128, 128
          %140 = vsyncadd %s134, %s139
          %s141 = smul.addr %s24, 4
          %s142 = sadd.s32 %s25, %s141
          %s143 = smul.addr %s142, 32
          %s144 = scalar_lea.hbm %s0, %s143
          %s145 = sshll.u32 %s137, 4
          %s146 = int_to_ptr.vmem [resolvable:$true] %s145
          %151 = dma.hbm_to_vmem [thread:$0]  %s144, 128, %s146, %s134, 32, 32, 2
        $region20: #{tpu_custom_call.1} parent=15 // pred_fallthru
          _
        // Predicated region
        $region21: #{tpu_custom_call.1} parent=15 // pred_check
          %p152 = pneg %p79
        $region22: #{tpu_custom_call.1} parent=15 // pred_check_branch
          %154 = sbr.rel (%p152) target = $region24
        $region23: #{tpu_custom_call.1} parent=15 // pred_region
          %s155 = sand.u32 %s69, 1
          %s156 = scalar_lea.sflag [#allocation8], %s155
          %s157 = sand.u32 %s69, 1
          %s158 = smul.addr %s157, 2
          %s159 = scalar_lea.vmem [#allocation7], %s158
          %s161 = ssub.s32 32, 32
          %162 = vsyncadd %s156, %s161
          %s163 = sadd.s32 %s25, %s24
          %s164 = smul.addr %s163, 32
          %s165 = scalar_lea.hbm %s1, %s164
          %s167 = sshll.u32 %s159, 4
          %s168 = int_to_ptr.vmem [resolvable:$true] %s167
          %170 = dma.hbm_to_vmem [thread:$0]  %s165, 32, %s168, %s156
        $region24: #{tpu_custom_call.1} parent=15 // pred_fallthru
          _
      $region16: #{tpu_custom_call.1} parent=5 // pred_fallthru
        _
      %p171 = scmp.le.s32.totalorder 1, %s17
      %p172 = scmp.lt.s32.totalorder %s17, 3
      %p173 = pnand %p171, %p172
      %p174 = pneg %p173
      // Predicated region
      $region25: #{tpu_custom_call.1} parent=5 // pred_check
        _
      $region26: #{tpu_custom_call.1} parent=5 // pred_check_branch
        %176 = sbr.rel (%p173) target = $region28
      $region27: #{tpu_custom_call.1} parent=5 // pred_region
        %s177 = ssub.s32 %s17, 1
        %s178 = sand.u32 %s44, 1
        %s179 = scalar_lea.sflag [#allocation5], %s178
        %s180 = sand.u32 %s44, 1
        %s181 = smul.addr %s180, 8
        %s182 = scalar_lea.vmem [#allocation4], %s181
        // Predicated region
        $region29: #{tpu_custom_call.1} parent=27 // pred_check
          %p183 = pneg %p57
        $region30: #{tpu_custom_call.1} parent=27 // pred_check_branch
          %185 = sbr.rel (%p183) target = $region32
        $region31: #{tpu_custom_call.1} parent=27 // pred_region
          %186 = dma.done %s179, 128
        $region32: #{tpu_custom_call.1} parent=27 // pred_fallthru
          _
        %s187 = sand.u32 %s72, 1
        %s188 = scalar_lea.sflag [#allocation8], %s187
        %s189 = sand.u32 %s72, 1
        %s190 = smul.addr %s189, 2
        %s191 = scalar_lea.vmem [#allocation7], %s190
        // Predicated region
        $region33: #{tpu_custom_call.1} parent=27 // pred_check
          %p192 = pneg %p85
        $region34: #{tpu_custom_call.1} parent=27 // pred_check_branch
          %194 = sbr.rel (%p192) target = $region36
        $region35: #{tpu_custom_call.1} parent=27 // pred_region
          %195 = dma.done %s188, 32
        $region36: #{tpu_custom_call.1} parent=27 // pred_fallthru
          _
        %s196 = sand.u32 %s44, 1
        %s197 = scalar_lea.sflag [#allocation5], %s196
        %s198 = sand.u32 %s44, 1
        %s199 = smul.addr %s198, 8
        %s200 = scalar_lea.vmem [#allocation4], %s199
        %p201 = pneg %p57
        %p202 = pneg %p54
        %s203 = sand.u32 %s72, 1
        %s204 = scalar_lea.sflag [#allocation8], %s203
        %s205 = sand.u32 %s72, 1
        %s206 = smul.addr %s205, 2
        %s207 = scalar_lea.vmem [#allocation7], %s206
        %p208 = pneg %p85
        %p209 = pneg %p82
        %p210 = pneg %p111
        %p211 = pneg %p108
        %s212 = sand.u32 %s98, 1
        %s213 = scalar_lea.sflag [#allocation6], %s212
        %s214 = sand.u32 %s98, 1
        %s215 = smul.addr %s214, 4
        %s216 = scalar_lea.vmem [#allocation9], %s215
        %p217 = scmp.eq.s32.totalorder %s27, 0
        // Predicated region
        $region37: #{tpu_custom_call.1} parent=27 // pred_check
          %p218 = pneg %p217
        $region38: #{tpu_custom_call.1} parent=27 // pred_check_branch
          %220 = sbr.rel (%p218) target = $region40
        $region39: #{tpu_custom_call.1} parent=27 // pred_region
          %221 = vst [vmem:[#allocation2] sm:$0x3] 0
          %222 = vst [vmem:[#allocation2 + $0x2] sm:$0x3] 0
          %223 = vst [vmem:[#allocation2 + $0x4] sm:$0x3] 0
          %224 = vst [vmem:[#allocation2 + $0x6] sm:$0x3] 0
          %225 = vst [vmem:[#allocation3] sm:$0x3] 0
          %226 = vst [vmem:[#allocation3 + $0x2] sm:$0x3] 0
          %227 = vst [vmem:[#allocation3 + $0x4] sm:$0x3] 0
          %228 = vst [vmem:[#allocation3 + $0x6] sm:$0x3] 0
        $region40: #{tpu_custom_call.1} parent=27 // pred_fallthru
          _
        %v229 = vld [vmem:[%s182] sm:$0x3]
        %s230 = scalar_lea.vmem %s182, 2 [#allocation4]
        %v231 = vld [vmem:[%s230] sm:$0x3]
        %vm232 = vcmp.gt.f32.partialorder %v231, %v229
        %v233 = vsel %vm232, %v231, %v229
        %v234 = vsel %vm232, 1, 0
        %s235 = scalar_lea.vmem %s182, 4 [#allocation4]
        %v236 = vld [vmem:[%s235] sm:$0x3]
        %vm237 = vcmp.gt.f32.partialorder %v236, %v233
        %v238 = vsel %vm237, %v236, %v233
        %v239 = vsel %vm237, 2, %v234
        %s240 = scalar_lea.vmem %s182, 6 [#allocation4]
        %v241 = vld [vmem:[%s240] sm:$0x3]
        %vm242 = vcmp.gt.f32.partialorder %v241, %v238
        %v243 = vsel %vm242, 3, %v239
        %v244 = vld [vmem:[%s191] sm:$0x3]
        %vm245 = vcmp.eq.s32.totalorder %v243, 0
        %vm246 = vcmp.eq.s32.totalorder %v244, 0
        %vm247 = vmand %vm245, %vm246
        %v248 = vld [vmem:[#allocation2] sm:$0x3]
        %v249 = vsel %vm247, 1, 0
        %v250 = vadd.s32 %v248, %v249
        %251 = vst [vmem:[#allocation2] sm:$0x3] %v250
        %v252 = vld [vmem:[#allocation3] sm:$0x3]
        %v253 = vsel %vm245, 1, 0
        %v254 = vadd.s32 %v252, %v253
        %255 = vst [vmem:[#allocation3] sm:$0x3] %v254
        %vm256 = vcmp.eq.s32.totalorder %v243, 1
        %vm257 = vcmp.eq.s32.totalorder %v244, 1
        %vm258 = vmand %vm256, %vm257
        %s259 = scalar_lea.vmem [#allocation2], 2
        %v260 = vld [vmem:[%s259] sm:$0x3]
        %v261 = vsel %vm258, 1, 0
        %v262 = vadd.s32 %v260, %v261
        %263 = vst [vmem:[%s259] sm:$0x3] %v262
        %s264 = scalar_lea.vmem [#allocation3], 2
        %v265 = vld [vmem:[%s264] sm:$0x3]
        %v266 = vsel %vm256, 1, 0
        %v267 = vadd.s32 %v265, %v266
        %268 = vst [vmem:[%s264] sm:$0x3] %v267
        %vm269 = vcmp.eq.s32.totalorder %v243, 2
        %vm270 = vcmp.eq.s32.totalorder %v244, 2
        %vm271 = vmand %vm269, %vm270
        %s272 = scalar_lea.vmem [#allocation2], 4
        %v273 = vld [vmem:[%s272] sm:$0x3]
        %v274 = vsel %vm271, 1, 0
        %v275 = vadd.s32 %v273, %v274
        %276 = vst [vmem:[%s272] sm:$0x3] %v275
        %s277 = scalar_lea.vmem [#allocation3], 4
        %v278 = vld [vmem:[%s277] sm:$0x3]
        %v279 = vsel %vm269, 1, 0
        %v280 = vadd.s32 %v278, %v279
        %281 = vst [vmem:[%s277] sm:$0x3] %v280
        %vm282 = vcmp.eq.s32.totalorder %v243, 3
        %vm283 = vcmp.eq.s32.totalorder %v244, 3
        %vm284 = vmand %vm282, %vm283
        %s285 = scalar_lea.vmem [#allocation2], 6
        %v286 = vld [vmem:[%s285] sm:$0x3]
        %v287 = vsel %vm284, 1, 0
        %v288 = vadd.s32 %v286, %v287
        %289 = vst [vmem:[%s285] sm:$0x3] %v288
        %s290 = scalar_lea.vmem [#allocation3], 6
        %v291 = vld [vmem:[%s290] sm:$0x3]
        %v292 = vsel %vm282, 1, 0
        %v293 = vadd.s32 %v291, %v292
        %294 = vst [vmem:[%s290] sm:$0x3] %v293
        // Predicated region
        $region41: #{tpu_custom_call.1} parent=27 // pred_check
          %p295 = pneg %p217
        $region42: #{tpu_custom_call.1} parent=27 // pred_check_branch
          %297 = sbr.rel (%p295) target = $region44
        $region43: #{tpu_custom_call.1} parent=27 // pred_region
          %v298 = vld [vmem:[#allocation2] sm:$0x3]
          %v299 = vld [vmem:[#allocation2 + $0x2] sm:$0x3]
          %v300 = vld [vmem:[#allocation2 + $0x4] sm:$0x3]
          %v301 = vld [vmem:[#allocation2 + $0x6] sm:$0x3]
          %v302 = vcvt.s32.f32 %v298
          %v303 = vcvt.s32.f32 %v299
          %v304 = vcvt.s32.f32 %v300
          %v305 = vcvt.s32.f32 %v301
          %v306 = vld [vmem:[#allocation3] sm:$0x3]
          %v307 = vld [vmem:[#allocation3 + $0x2] sm:$0x3]
          %v308 = vld [vmem:[#allocation3 + $0x4] sm:$0x3]
          %v309 = vld [vmem:[#allocation3 + $0x6] sm:$0x3]
          %v310 = vcvt.s32.f32 %v306
          %v311 = vcvt.s32.f32 %v307
          %v312 = vcvt.s32.f32 %v308
          %v313 = vcvt.s32.f32 %v309
          %vm314 = vcmask 1041408
          %v315 = vsel %vm314, %v302, 0.0
          %316 = vadd.xlane.f32.xlu0 %v315
          %v317 = vpop.xlane.xlu0 %316
          %v318 = vsel %vm314, %v303, 0.0
          %319 = vadd.xlane.f32.xlu0 %v318
          %v320 = vpop.xlane.xlu0 %319
          %v321 = vsel %vm314, %v304, 0.0
          %322 = vadd.xlane.f32.xlu0 %v321
          %v323 = vpop.xlane.xlu0 %322
          %v324 = vsel %vm314, %v305, 0.0
          %325 = vadd.xlane.f32.xlu0 %v324
          %v326 = vpop.xlane.xlu0 %325
          %v327 = vsel %vm314, %v317, 0.0
          %v328 = vrot.slane %v327, 4
          %v329 = vadd.f32 %v327, %v328
          %v330 = vrot.slane %v329, 2
          %v331 = vadd.f32 %v329, %v330
          %v332 = vrot.slane %v331, 1
          %v333 = vadd.f32 %v331, %v332
          %v334 = vsel %vm314, %v320, 0.0
          %v335 = vrot.slane %v334, 4
          %v336 = vadd.f32 %v334, %v335
          %v337 = vrot.slane %v336, 2
          %v338 = vadd.f32 %v336, %v337
          %v339 = vrot.slane %v338, 1
          %v340 = vadd.f32 %v338, %v339
          %v341 = vsel %vm314, %v323, 0.0
          %v342 = vrot.slane %v341, 4
          %v343 = vadd.f32 %v341, %v342
          %v344 = vrot.slane %v343, 2
          %v345 = vadd.f32 %v343, %v344
          %v346 = vrot.slane %v345, 1
          %v347 = vadd.f32 %v345, %v346
          %v348 = vsel %vm314, %v326, 0.0
          %v349 = vrot.slane %v348, 4
          %v350 = vadd.f32 %v348, %v349
          %v351 = vrot.slane %v350, 2
          %v352 = vadd.f32 %v350, %v351
          %v353 = vrot.slane %v352, 1
          %v354 = vadd.f32 %v352, %v353
          %v355 = vsel %vm314, %v310, 0.0
          %356 = vadd.xlane.f32.xlu0 %v355
          %v357 = vpop.xlane.xlu0 %356
          %v358 = vsel %vm314, %v311, 0.0
          %359 = vadd.xlane.f32.xlu0 %v358
          %v360 = vpop.xlane.xlu0 %359
          %v361 = vsel %vm314, %v312, 0.0
          %362 = vadd.xlane.f32.xlu0 %v361
          %v363 = vpop.xlane.xlu0 %362
          %v364 = vsel %vm314, %v313, 0.0
          %365 = vadd.xlane.f32.xlu0 %v364
          %v366 = vpop.xlane.xlu0 %365
          %v367 = vsel %vm314, %v357, 0.0
          %v368 = vrot.slane %v367, 4
          %v369 = vadd.f32 %v367, %v368
          %v370 = vrot.slane %v369, 2
          %v371 = vadd.f32 %v369, %v370
          %v372 = vrot.slane %v371, 1
          %v373 = vadd.f32 %v371, %v372
          %v374 = vsel %vm314, %v360, 0.0
          %v375 = vrot.slane %v374, 4
          %v376 = vadd.f32 %v374, %v375
          %v377 = vrot.slane %v376, 2
          %v378 = vadd.f32 %v376, %v377
          %v379 = vrot.slane %v378, 1
          %v380 = vadd.f32 %v378, %v379
          %v381 = vsel %vm314, %v363, 0.0
          %v382 = vrot.slane %v381, 4
          %v383 = vadd.f32 %v381, %v382
          %v384 = vrot.slane %v383, 2
          %v385 = vadd.f32 %v383, %v384
          %v386 = vrot.slane %v385, 1
          %v387 = vadd.f32 %v385, %v386
          %v388 = vsel %vm314, %v366, 0.0
          %v389 = vrot.slane %v388, 4
          %v390 = vadd.f32 %v388, %v389
          %v391 = vrot.slane %v390, 2
          %v392 = vadd.f32 %v390, %v391
          %v393 = vrot.slane %v392, 1
          %v394 = vadd.f32 %v392, %v393
          %v395 = vadd.f32 %v333, 1e-09
          %v396 = vadd.f32 %v340, 1e-09
          %v397 = vadd.f32 %v347, 1e-09
          %v398 = vadd.f32 %v354, 1e-09
          %v399 = vadd.f32 %v373, 1e-09
          %v400 = vadd.f32 %v380, 1e-09
          %v401 = vadd.f32 %v387, 1e-09
          %v402 = vadd.f32 %v394, 1e-09
          %v403 = vrcp.pop %v399
          %v404 = vmul.f32 %v395, %v403
          %v405 = vrcp.pop %v400
          %v406 = vmul.f32 %v396, %v405
          %v407 = vrcp.pop %v401
          %v408 = vmul.f32 %v397, %v407
          %v409 = vrcp.pop %v402
          %v410 = vmul.f32 %v398, %v409
          %vm415 = vcmask 1041409
          %v416 = vsel %vm415, %v406, %v404
          %vm417 = vcmask 1042434
          %v418 = vsel %vm417, %v408, %v416
          %vm419 = vcmask 1043459
          %v420 = vsel %vm419, %v410, %v418
          %422 = vst [vmem:[%s216] sm:$0xf] %v420
        $region44: #{tpu_custom_call.1} parent=27 // pred_fallthru
          _
        %s423 = sand.u32 %s98, 1
        %s424 = scalar_lea.sflag [#allocation6], %s423
        %s425 = sand.u32 %s98, 1
        %s426 = smul.addr %s425, 4
        %s427 = scalar_lea.vmem [#allocation9], %s426
        // Predicated region
        $region45: #{tpu_custom_call.1} parent=27 // pred_check
          %p428 = pneg %p108
        $region46: #{tpu_custom_call.1} parent=27 // pred_check_branch
          %430 = sbr.rel (%p428) target = $region48
        $region47: #{tpu_custom_call.1} parent=27 // pred_region
          %s432 = ssub.s32 64, 64
          %433 = vsyncadd %s424, %s432
          %s434 = smul.addr %s26, 64
          %s435 = scalar_lea.hbm %s2, %s434
          %s437 = sshll.u32 %s427, 4
          %s438 = int_to_ptr.vmem [resolvable:$true] %s437
          %440 = dma.vmem_to_hbm [thread:$0]  %s438, 64, %s435, %s424
        $region48: #{tpu_custom_call.1} parent=27 // pred_fallthru
          _
      $region28: #{tpu_custom_call.1} parent=5 // pred_fallthru
        _
      %p441 = scmp.le.s32.totalorder 2, %s17
      // Predicated region
      $region49: #{tpu_custom_call.1} parent=5 // pred_check
        %p442 = pneg %p441
      $region50: #{tpu_custom_call.1} parent=5 // pred_check_branch
        %444 = sbr.rel (%p442) target = $region52
      $region51: #{tpu_custom_call.1} parent=5 // pred_region
        %s445 = ssub.s32 %s17, 2
        // Predicated region
        $region53: #{tpu_custom_call.1} parent=51 // pred_check
          %p446 = pneg %p114
        $region54: #{tpu_custom_call.1} parent=51 // pred_check_branch
          %448 = sbr.rel (%p446) target = $region56
        $region55: #{tpu_custom_call.1} parent=51 // pred_region
          %s449 = sand.u32 %s99, 1
          %s450 = scalar_lea.sflag [#allocation6], %s449
          %s451 = sand.u32 %s99, 1
          %s452 = smul.addr %s451, 4
          %s453 = scalar_lea.vmem [#allocation9], %s452
          %454 = dma.done %s450, 64
        $region56: #{tpu_custom_call.1} parent=51 // pred_fallthru
          _
      $region52: #{tpu_custom_call.1} parent=5 // pred_fallthru
        _
    $region6: #{tpu_custom_call.1} parent=1 // loop_footer
      %s21 = sadd.s32 1, %s17
    $region7: #{tpu_custom_call.1} parent=1 // loop_footer_branch
      %16 = sbr.rel target = $region3
    $region8: #{tpu_custom_call.1} parent=1 // loop_exit
      _
    %455 = vsyncpa [#allocation5], 1
    %s456 = scalar_lea.sflag [#allocation5], 1
    %457 = vsyncpa %s456, 1
    %458 = vsyncpa [#allocation8], 1
    %s459 = scalar_lea.sflag [#allocation8], 1
    %460 = vsyncpa %s459, 1
    %461 = vsyncpa [#allocation6], 1
    %s462 = scalar_lea.sflag [#allocation6], 1
    %463 = vsyncpa %s462, 1

</llo_original>
